<compile_context>
chip_gen: v6e
topology: v6e:2x2x1
jax: 0.10.0
libtpu: 0.0.40
codegen_flags: <defaults>
</compile_context>

<pallas_src>
import functools

import jax
import jax.numpy as jnp
from jax.experimental import pallas as pl
from jax.experimental.pallas import tpu as pltpu


def _cdiv(a, b):
    return -(-a // b)


def _round_up(x, m):
    return ((x + m - 1) // m) * m


def _vmem_capacity_bytes():
    """Per-core VMEM capacity; conservative fallback if the query fails."""
    try:
        return int(pltpu.get_tpu_info().vmem_capacity_bytes)
    except Exception:
        return 64 * 1024 * 1024  # v7x per-TensorCore (smallest of v5e/v6e/v7x)


# ----------------------------- kernels ------------------------------------ #

def _mu_kernel(x_ref, w_ref, b_ref, mu_ref, *, max_mu, unbounded):
    """Fixed-sigma path: mu = [max_mu * tanh](x @ Wmu + bmu) for one batch tile."""
    mu = jnp.dot(x_ref[...], w_ref[...], preferred_element_type=jnp.float32)
    mu = mu + b_ref[...]                       # (1, A) bias broadcasts
    if not unbounded:
        mu = max_mu * jnp.tanh(mu)
    mu_ref[...] = mu.astype(mu_ref.dtype)


def _fused_heads_kernel(x_ref, w_ref, b_ref, mu_ref, sigma_ref, *, out_dim,
                        max_mu, unbounded, sigma_min, sigma_max):
    """Conditioned-sigma path: ONE fused matmul y = x @ [Wmu | Wsig] + [bmu | bsig],
    then two direct output stores (no wrapper-side slicing of a packed slab)."""
    y = jnp.dot(x_ref[...], w_ref[...], preferred_element_type=jnp.float32)
    y = y + b_ref[...]                         # (1, 2A) bias broadcasts
    mu = y[:, :out_dim]
    if not unbounded:
        mu = max_mu * jnp.tanh(mu)
    sigma = jnp.exp(jnp.clip(y[:, out_dim:], sigma_min, sigma_max))
    mu_ref[...] = mu.astype(mu_ref.dtype)
    sigma_ref[...] = sigma.astype(sigma_ref.dtype)


# ----------------------------- wrapper ------------------------------------ #

class TanhDiagGaussianPallas:
    """JAX/Pallas port of TanhDiagGaussian's forward pass."""

    def __init__(self, latent_dim, output_dim, unbounded=False,
                 conditioned_sigma=False, max_mu=1.0,
                 sigma_min=-5.0, sigma_max=2.0, key=None,
                 block_batch=16384, min_rows_per_core=1024):
        self.latent_dim = latent_dim
        self.output_dim = output_dim
        self._unbounded = unbounded
        self._c_sigma = conditioned_sigma
        self._max = float(max_mu)
        self._sigma_min = float(sigma_min)
        self._sigma_max = float(sigma_max)
        self._block_batch = int(block_batch)
        self._min_rows_per_core = int(min_rows_per_core)

        if key is None:
            key = jax.random.PRNGKey(0)
        k1, k2, k3, k4 = jax.random.split(key, 4)
        bound = 1.0 / (latent_dim ** 0.5)  # matches torch.nn.Linear default init
        # weights stored [in, out] (transposed vs torch's nn.Linear.weight)
        self.w_mu = jax.random.uniform(k1, (latent_dim, output_dim),
                                       jnp.float32, -bound, bound)
        self.b_mu = jax.random.uniform(k2, (1, output_dim),
                                       jnp.float32, -bound, bound)
        if conditioned_sigma:
            self.w_sigma = jax.random.uniform(k3, (latent_dim, output_dim),
                                              jnp.float32, -bound, bound)
            self.b_sigma = jax.random.uniform(k4, (1, output_dim),
                                              jnp.float32, -bound, bound)
            # Pack mu/sigma heads into one weight slab -> one fused matmul,
            # one weight DMA per buffer.
            self.w_packed = jnp.concatenate([self.w_mu, self.w_sigma], axis=1)
            self.b_packed = jnp.concatenate([self.b_mu, self.b_sigma], axis=1)
        else:
            # torch: nn.Parameter(torch.zeros(output_dim, 1)) viewed as (1, A)
            self.sigma_param = jnp.zeros((1, output_dim), jnp.float32)
            # exp(sigma_param) is input-independent: precompute once, no kernel.
            self._exp_sigma = jnp.exp(self.sigma_param)

    # ---- batch-tile sizing (review items: big tiles, megacore, no padding,
    # per-generation VMEM awareness) ----
    def _plan_tiles(self, B, L, ncols, in_bytes, out_bytes):
        row_align = {4: 8, 2: 16, 1: 32}.get(in_bytes, 8)
        vmem_budget = int(0.70 * _vmem_capacity_bytes())   # headroom for Mosaic
        # double-buffered streamed tiles (x + outputs) + resident weights/bias
        row_stream_bytes = 2 * (L * in_bytes + ncols * out_bytes)
        fixed_bytes = 2 * (L * ncols * 4 + ncols * 4)
        bm_vmem = (vmem_budget - fixed_bytes) // max(row_stream_bytes, 1)
        bm_vmem = max(row_align, (bm_vmem // row_align) * row_align)
        bm_cap = max(row_align, min(self._block_batch, bm_vmem))

        if B > bm_cap:
            steps = _cdiv(B, bm_cap)
        else:
            # Whole batch fits in one step: split into 2 steps when each half
            # is still big so both v7x TensorCores get work (grid >= 2).
            steps = 2 if B >= 2 * self._min_rows_per_core else 1
        bm = min(bm_cap, _round_up(_cdiv(B, steps), row_align))
        if bm >= B:
            bm = B                 # single full-extent block (any B is legal)
        grid = (_cdiv(B, bm),)     # ragged final block handled by Pallas
        return bm, grid, vmem_budget

    def __call__(self, logits):
        # TODO(synk): only 2D (batch, latent) logits supported; flatten leading
        # dims in the caller if needed.
        assert logits.ndim == 2 and logits.shape[1] == self.latent_dim
        B, L = logits.shape
        A = self.output_dim
        ncols = 2 * A if self._c_sigma else A

        in_bytes = logits.dtype.itemsize        # stream x in its native dtype
        out_bytes = 4                           # f32 outputs
        bm, grid, vmem_budget = self._plan_tiles(B, L, ncols, in_bytes, out_bytes)

        cparams = pltpu.CompilerParams(
            dimension_semantics=("parallel",),  # shard batch across TCs (v7x)
            vmem_limit_bytes=vmem_budget,       # explicit: v5e default is 16 MiB
        )
        x_spec = pl.BlockSpec((bm, L), lambda i: (i, 0))

        if self._c_sigma:
            kernel = functools.partial(
                _fused_heads_kernel, out_dim=A, max_mu=self._max,
                unbounded=self._unbounded, sigma_min=self._sigma_min,
                sigma_max=self._sigma_max)
            mu, sigma = pl.pallas_call(
                kernel,
                out_shape=(jax.ShapeDtypeStruct((B, A), jnp.float32),
                           jax.ShapeDtypeStruct((B, A), jnp.float32)),
                grid=grid,
                in_specs=[x_spec,
                          pl.BlockSpec((L, ncols), lambda i: (0, 0)),  # resident
                          pl.BlockSpec((1, ncols), lambda i: (0, 0))],  # resident
                out_specs=(pl.BlockSpec((bm, A), lambda i: (i, 0)),
                           pl.BlockSpec((bm, A), lambda i: (i, 0))),
                compiler_params=cparams,
            )(logits, self.w_packed, self.b_packed)
        else:
            kernel = functools.partial(_mu_kernel, max_mu=self._max,
                                       unbounded=self._unbounded)
            mu = pl.pallas_call(
                kernel,
                out_shape=jax.ShapeDtypeStruct((B, A), jnp.float32),
                grid=grid,
                in_specs=[x_spec,
                          pl.BlockSpec((L, A), lambda i: (0, 0)),      # resident
                          pl.BlockSpec((1, A), lambda i: (0, 0))],     # resident
                out_specs=pl.BlockSpec((bm, A), lambda i: (i, 0)),
                compiler_params=cparams,
            )(logits, self.w_mu, self.b_mu)
            # Input-independent sigma: return the (1, A) value; consumers
            # (Normal) broadcast, so no eager B x A HBM materialization.
            sigma = self._exp_sigma

        # torch module returns TanhNormalWrapper(mu, sigma, self._max);
        # return its defining parameters.
        return mu, sigma, self._max


def _reference(logits, mod):
    """Pure-JAX reference of the forward math for verification."""
    logits = logits.astype(jnp.float32)
    mu = logits @ mod.w_mu + mod.b_mu
    if not mod._unbounded:
        mu = mod._max * jnp.tanh(mu)
    if mod._c_sigma:
        s = jnp.clip(logits @ mod.w_sigma + mod.b_sigma,
                     mod._sigma_min, mod._sigma_max)
        sigma = jnp.exp(s)
    else:
        sigma = jnp.exp(jnp.broadcast_to(mod.sigma_param, mu.shape))
    return mu, sigma


if __name__ == "__main__":
    key = jax.random.PRNGKey(0)
    k_param, k_x = jax.random.split(key)

    latent_dim, output_dim = 32, 8
    ok = True

    # 1) f32 logits, all config combinations (single-tile path).
    logits = jax.random.normal(k_x, (8, latent_dim), jnp.float32)
    for cond_sigma in (False, True):
        for unbounded in (False, True):
            mod = TanhDiagGaussianPallas(latent_dim, output_dim,
                                         unbounded=unbounded,
                                         conditioned_sigma=cond_sigma,
                                         max_mu=1.0, key=k_param)
            mu, sigma, action_scale = mod(logits)
            jax.block_until_ready((mu, sigma))
            mu_ref, sigma_ref = _reference(logits, mod)
            ok &= bool(jnp.allclose(mu, mu_ref, atol=1e-5))
            ok &= bool(jnp.allclose(jnp.broadcast_to(sigma, sigma_ref.shape),
                                    sigma_ref, atol=1e-5))
            ok &= (action_scale == mod._max)

    # 2) Multi-step grid with a ragged final block (no wrapper-side padding):
    #    B=20 with a forced tiny tile -> grid of 3, last block partial.
    logits20 = jax.random.normal(k_x, (20, latent_dim), jnp.float32)
    mod = TanhDiagGaussianPallas(latent_dim, output_dim, conditioned_sigma=True,
                                 key=k_param, block_batch=8)
    mu, sigma, _ = mod(logits20)
    jax.block_until_ready((mu, sigma))
    mu_ref, sigma_ref = _reference(logits20, mod)
    ok &= bool(jnp.allclose(mu, mu_ref, atol=1e-5))
    ok &= bool(jnp.allclose(sigma, sigma_ref, atol=1e-5))

    # 3) Native bf16 streaming of logits (f32 accumulation inside the kernel).
    logits_bf16 = logits.astype(jnp.bfloat16)
    mod = TanhDiagGaussianPallas(latent_dim, output_dim, conditioned_sigma=True,
                                 key=k_param)
    mu, sigma, _ = mod(logits_bf16)
    jax.block_until_ready((mu, sigma))
    mu_ref, sigma_ref = _reference(logits_bf16, mod)
    ok &= bool(jnp.allclose(mu, mu_ref, atol=2e-2, rtol=2e-2))
    ok &= bool(jnp.allclose(sigma, sigma_ref, atol=2e-2, rtol=2e-2))

    print("KERNEL_OK" if ok else "MISMATCH")
</pallas_src>

<mosaic_0001>
module attributes {stable_mosaic.version = 11 : i64} {
  func.func @_mu_kernel(%arg0: i32, %arg1: memref<8x32xf32, #tpu.memory_space<vmem>>, %arg2: memref<32x8xf32, #tpu.memory_space<vmem>>, %arg3: memref<1x8xf32, #tpu.memory_space<vmem>>, %arg4: memref<8x8xf32, #tpu.memory_space<vmem>>) attributes {dimension_semantics = [#tpu.dimension_semantics<parallel>], iteration_bounds = array<i64: 1>, scalar_prefetch = 0 : i64, scratch_operands = 0 : i64, tpu.core_type = #tpu.core_type<tc>, window_params = [{transform_indices = @transform_0, window_bounds = array<i64: 8, 32>}, {pipeline_mode = #tpu.pipeline_mode<synchronous>, transform_indices = @transform_1, window_bounds = array<i64: 32, 8>}, {pipeline_mode = #tpu.pipeline_mode<synchronous>, transform_indices = @transform_2, window_bounds = array<i64: 1, 8>}, {transform_indices = @transform_3, window_bounds = array<i64: 8, 8>}]} {
    %c0 = arith.constant 0 : index
    %c0_0 = arith.constant 0 : index
    %0 = vector.load %arg1[%c0, %c0_0] : memref<8x32xf32, #tpu.memory_space<vmem>>, vector<8x32xf32>
    %c0_1 = arith.constant 0 : index
    %c0_2 = arith.constant 0 : index
    %1 = vector.load %arg2[%c0_1, %c0_2] : memref<32x8xf32, #tpu.memory_space<vmem>>, vector<32x8xf32>
    %cst = arith.constant dense<0.000000e+00> : vector<8x8xf32>
    %2 = tpu.matmul %0, %1, %cst {dimension_numbers = #tpu.dot_dimension_numbers<[1], [0], [0], [1], [0, 0, 1, 1], [], []>} : vector<8x32xf32>, vector<32x8xf32>, vector<8x8xf32> -> vector<8x8xf32>
    %c0_3 = arith.constant 0 : index
    %c0_4 = arith.constant 0 : index
    %3 = vector.load %arg3[%c0_3, %c0_4] : memref<1x8xf32, #tpu.memory_space<vmem>>, vector<1x8xf32>
    %4 = vector.broadcast %3 : vector<1x8xf32> to vector<8x8xf32>
    %5 = arith.addf %2, %4 : vector<8x8xf32>
    %6 = math.tanh %5 : vector<8x8xf32>
    %cst_5 = arith.constant 1.000000e+00 : f32
    %7 = vector.broadcast %cst_5 : f32 to vector<8x8xf32>
    %8 = arith.mulf %7, %6 : vector<8x8xf32>
    %c0_6 = arith.constant 0 : index
    %c0_7 = arith.constant 0 : index
    %9 = vector.load %arg4[%c0_6, %c0_7] : memref<8x8xf32, #tpu.memory_space<vmem>>, vector<8x8xf32>
    tpu.vector_store %arg4[%c0_6, %c0_7], %8 {strides = array<i32>} : memref<8x8xf32, #tpu.memory_space<vmem>>, vector<8x8xf32>,
    return
  }
  func.func @transform_0(%arg0: i32) -> (i32, i32) {
    %c0_i32 = arith.constant 0 : i32
    %c0_i32_0 = arith.constant 0 : i32
    return %arg0, %c0_i32 : i32, i32
  }
  func.func @transform_1(%arg0: i32) -> (i32, i32) {
    %c0_i32 = arith.constant 0 : i32
    %c0_i32_0 = arith.constant 0 : i32
    %c0_i32_1 = arith.constant 0 : i32
    return %c0_i32, %c0_i32_0 : i32, i32
  }
  func.func @transform_2(%arg0: i32) -> (i32, i32) {
    %c0_i32 = arith.constant 0 : i32
    %c0_i32_0 = arith.constant 0 : i32
    %c0_i32_1 = arith.constant 0 : i32
    return %c0_i32, %c0_i32_0 : i32, i32
  }
  func.func @transform_3(%arg0: i32) -> (i32, i32) {
    %c0_i32 = arith.constant 0 : i32
    %c0_i32_0 = arith.constant 0 : i32
    return %arg0, %c0_i32 : i32, i32
  }
}

</mosaic_0001>

<llo_original>
// kernel: tpu_custom_call.1
$region0: #{tpu_custom_call.1}
  #allocation0 [shape = 'u32[]', space=smem, size = 0x4, offset = 0x4, fixed_abs, tag = 'smem constant byte address 0x4 - core index']
  #allocation1 [shape = 'u32[144,128]{1,0:T(1,128)}', space=vmem, size = 0x12000, scoped, tag = 'internal scratch']
  %s0 = inlined_call_operand.vmem [shape: f32[8,32], index: 0, kind: input, shape index: {}]
  %s1 = inlined_call_operand.vmem [shape: f32[32,8], index: 1, kind: input, shape index: {}]
  %s2 = inlined_call_operand.vmem [shape: f32[1,8], index: 2, kind: input, shape index: {}]
  %s3 = inlined_call_operand.hbm [shape: f32[8,8], index: 3, kind: output, shape index: {}]
  %s4 = sld [smem:[#allocation0]]
  $region22: #{tpu_custom_call.1} parent=0
    _
  %s6 = ssub.s32 1, %s4
  %s7 = scalar_select 0, %s6, %s4
  $region1: #{tpu_custom_call.1} parent=0
    #allocation2 [shape = 'u8[4096]{0}', space=vmem, size = 0x1000, scoped, tag = 'output window, operand 0, single buffered']
    #allocation3 [shape = 's32[1]{0}', space=sflag, size = 0x4, scoped, tag = 'scoped memory for tpu_custom_call.1']
    %8 = vsyncpa [#allocation3], 0
    // Predicated region
    $region2: #{tpu_custom_call.1} parent=1 // pred_check
      _
    $region3: #{tpu_custom_call.1} parent=1 // pred_check_branch
      %10 = sbr.rel (0) target = $region5
    $region4: #{tpu_custom_call.1} parent=1 // pred_region
      _
    $region5: #{tpu_custom_call.1} parent=1 // pred_fallthru
      _
    // Predicated region
    $region6: #{tpu_custom_call.1} parent=1 // pred_check
      _
    $region7: #{tpu_custom_call.1} parent=1 // pred_check_branch
      %12 = sbr.rel (0) target = $region9
    $region8: #{tpu_custom_call.1} parent=1 // pred_region
      _
    $region9: #{tpu_custom_call.1} parent=1 // pred_fallthru
      _
    // Predicated region
    $region10: #{tpu_custom_call.1} parent=1 // pred_check
      _
    $region11: #{tpu_custom_call.1} parent=1 // pred_check_branch
      %14 = sbr.rel (0) target = $region13
    $region12: #{tpu_custom_call.1} parent=1 // pred_region
      _
    $region13: #{tpu_custom_call.1} parent=1 // pred_fallthru
      _
    %v15 = vld [vmem:[%s0] sm:$0xff]
    %v16 = vld [vmem:[%s1] sm:$0xff]
    %v17 = vld [vmem:[%s1 + $0x8] sm:$0xff]
    %v18 = vld [vmem:[%s1 + $0x10] sm:$0xff]
    %v19 = vld [vmem:[%s1 + $0x18] sm:$0xff]
    %v20 = vld [vmem:[%s2] sm:$0x1]
    %v22 = vlaneseq
    %v23 = vshrl.u32 %v22, 7
    %v24 = vsub.s32 0, %v23
    %v25 = vrot.slane %v20, %v24
    %vm27 = vcmask 261120
    %v29 = vsel %vm27, %v15, 0
    %31 = vmatprep.subr.mxu0 0.0
    %32 = vmatpush1.msra.mxu0 0.0
    %33 = vmatprep.subr.mxu0 0.0
    %34 = vmatpush1.msra.mxu0 0.0
    %35 = vmatprep.subr.mxu0 0.0
    %36 = vmatpush1.msra.mxu0 0.0
    %37 = vmatprep.subr.mxu0 0.0
    %38 = vmatpush1.msra.mxu0 0.0
    %39 = vmatprep.subr.mxu0 0.0
    %40 = vmatpush1.msra.mxu0 0.0
    %41 = vmatprep.subr.mxu0 0.0
    %42 = vmatpush1.msra.mxu0 0.0
    %43 = vmatprep.subr.mxu0 0.0
    %44 = vmatpush1.msra.mxu0 0.0
    %45 = vmatprep.subr.mxu0 0.0
    %46 = vmatpush1.msra.mxu0 0.0
    %47 = vmatprep.subr.mxu0 0.0
    %48 = vmatpush1.msra.mxu0 0.0
    %49 = vmatprep.subr.mxu0 0.0
    %50 = vmatpush1.msra.mxu0 0.0
    %51 = vmatprep.subr.mxu0 0.0
    %52 = vmatpush1.msra.mxu0 0.0
    %53 = vmatprep.subr.mxu0 0.0
    %54 = vmatpush1.msra.mxu0 0.0
    %55 = vmatprep.subr.mxu0 0.0
    %56 = vmatpush1.msra.mxu0 %v19
    %57 = vmatprep.subr.mxu0 0.0
    %58 = vmatpush1.msra.mxu0 %v18
    %59 = vmatprep.subr.mxu0 0.0
    %60 = vmatpush1.msra.mxu0 %v17
    %61 = vmatprep.subr.mxu0 0.0
    %62 = vmatpush1.msra.mxu0 %v16
    %63 = vmatprep.subr.mxu0 0.0
    %64 = vmatpush2.msra.mxu0 0.0
    %65 = vmatprep.subr.mxu0 0.0
    %66 = vmatpush2.msra.mxu0 0.0
    %67 = vmatprep.subr.mxu0 0.0
    %68 = vmatpush2.msra.mxu0 0.0
    %69 = vmatprep.subr.mxu0 0.0
    %70 = vmatpush2.msra.mxu0 0.0
    %71 = vmatprep.subr.mxu0 0.0
    %72 = vmatpush2.msra.mxu0 0.0
    %73 = vmatprep.subr.mxu0 0.0
    %74 = vmatpush2.msra.mxu0 0.0
    %75 = vmatprep.subr.mxu0 0.0
    %76 = vmatpush2.msra.mxu0 0.0
    %77 = vmatprep.subr.mxu0 0.0
    %78 = vmatpush2.msra.mxu0 0.0
    %79 = vmatprep.subr.mxu0 0.0
    %80 = vmatpush2.msra.mxu0 0.0
    %81 = vmatprep.subr.mxu0 0.0
    %82 = vmatpush2.msra.mxu0 0.0
    %83 = vmatprep.subr.mxu0 0.0
    %84 = vmatpush2.msra.mxu0 0.0
    %85 = vmatprep.subr.mxu0 0.0
    %86 = vmatpush2.msra.mxu0 0.0
    %87 = vmatprep.subr.mxu0 0.0
    %88 = vmatpush2.msra.mxu0 0.0
    %89 = vmatprep.subr.mxu0 0.0
    %90 = vmatpush2.msra.mxu0 0.0
    %91 = vmatprep.subr.mxu0 0.0
    %92 = vmatpush2.msra.mxu0 0.0
    %93 = vmatprep.subr.mxu0 0.0
    %94 = vmatpush2.msra.mxu0 0.0
    %95 = vmatprep.mubr.f32.mxu0 0.0
    %96 = vmatmul.mubr.f32.gmra.mxu0 %v29
    %v97 = vpop.f32.mrf.mxu0
    %v98 = vadd.f32 %v25, %v97
    %v99 = vpop.f32.mrf.mxu0
    %100 = vdwg.mxu0
    %v101 = vtanh.pop %v98
    %vm102 = vcmask 64512
    %103 = vst.msk [vmem:[#allocation2] sm:$0xff] %vm102, %v101
    // Predicated region
    $region14: #{tpu_custom_call.1} parent=1 // pred_check
      _
    $region15: #{tpu_custom_call.1} parent=1 // pred_check_branch
      %105 = sbr.rel (0) target = $region17
    $region16: #{tpu_custom_call.1} parent=1 // pred_region
      %s107 = ssub.s32 128, 128
      %108 = vsyncadd [#allocation3], %s107
      %s110 = sshll.u32 [#allocation2], 4
      %s111 = int_to_ptr.vmem [resolvable:$true] %s110
      %113 = dma.vmem_to_hbm [thread:$0]  %s111, 128, %s3, [#allocation3]
    $region17: #{tpu_custom_call.1} parent=1 // pred_fallthru
      _
    // Predicated region
    $region18: #{tpu_custom_call.1} parent=1 // pred_check
      _
    $region19: #{tpu_custom_call.1} parent=1 // pred_check_branch
      %115 = sbr.rel (0) target = $region21
    $region20: #{tpu_custom_call.1} parent=1 // pred_region
      %116 = dma.done [#allocation3], 128
    $region21: #{tpu_custom_call.1} parent=1 // pred_fallthru
      _
    %117 = vsyncpa [#allocation3], 1

</llo_original>
